<compile_context>
chip_gen: v7x
topology: tpu7x:2x2x1
jax: 0.10.0
libtpu: 0.0.40
codegen_flags: <defaults>
</compile_context>

<pallas_src>
import functools

import jax
import jax.numpy as jnp
from jax.experimental import pallas as pl
from jax.experimental.pallas import tpu as pltpu


# ----------------------------- Pallas kernel ------------------------------ #
def _temporal_block_kernel(x_ref, w1_ref, b1_ref, w2_ref, b2_ref, *rest,
                           kernel_size, dilation, has_downsample):
    # x_ref : (bt, Cin, L)    native NCL batch tile
    # w1_ref: (Cout, K*Cin)   conv1 weight, taps folded into the contraction
    # w2_ref: (Cout, K*Cout)  conv2 weight
    # b*_ref: (Cout, 1)
    # wd_ref: (Cout, Cin), bd_ref: (Cout, 1)      (only if has_downsample)
    # o_ref : (bt, Cout, L)
    # xs_ref: VMEM (K*Cin,  L) scratch (stacked shifted conv1 operand)
    # hs_ref: VMEM (K*Cout, L) scratch (stacked shifted conv2 operand)
    if has_downsample:
        wd_ref, bd_ref, o_ref, xs_ref, hs_ref = rest
    else:
        o_ref, xs_ref, hs_ref = rest

    bt, c_in, L = x_ref.shape
    c_out = o_ref.shape[1]
    K = kernel_size

    # hoisted loads (shared across the batch tile)
    w1 = w1_ref[...]
    w2 = w2_ref[...]
    b1 = b1_ref[...]
    b2 = b2_ref[...]
    if has_downsample:
        wd = wd_ref[...]
        bd = bd_ref[...]

    # lane-index iotas, hoisted out of the batch loop
    t_in = jax.lax.broadcasted_iota(jnp.int32, (c_in, L), 1)
    t_hid = jax.lax.broadcasted_iota(jnp.int32, (c_out, L), 1)

    def stack_causal(v, stack_ref, t_idx):
        # im2col-style operand: row block k holds v delayed by (K-1-k)*dilation
        # samples, with zeros filling the causal left edge.
        C = v.shape[0]
        for k in range(K):                                # static unroll over taps
            s = (K - 1 - k) * dilation
            if s == 0:
                part = v
            else:
                part = jnp.where(t_idx >= s, pltpu.roll(v, shift=s, axis=1), 0.0)
            stack_ref[pl.ds(k * C, C), :] = part
        return stack_ref[...]

    for b in range(bt):                                   # static unroll over batch tile
        xb = x_ref[b]                                     # (Cin, L)

        # conv1 (weight-normed, dilated, causal) + chomp + ReLU ; dropout = identity
        h1 = jnp.dot(w1, stack_causal(xb, xs_ref, t_in),
                     preferred_element_type=jnp.float32) + b1
        h1 = jnp.maximum(h1, 0.0)

        # conv2 + chomp + ReLU ; dropout = identity
        h2 = jnp.dot(w2, stack_causal(h1, hs_ref, t_hid),
                     preferred_element_type=jnp.float32) + b2
        h2 = jnp.maximum(h2, 0.0)

        # residual (identity or 1x1 conv downsample) + final ReLU
        if has_downsample:
            res = jnp.dot(wd, xb, preferred_element_type=jnp.float32) + bd
        else:
            res = xb
        o_ref[b, :, :] = jnp.maximum(h2 + res, 0.0).astype(o_ref.dtype)


# ------------------------------ JAX wrapper ------------------------------- #
def temporal_block_forward(x, w1, b1, w2, b2, wd=None, bd=None, *,
                           kernel_size, dilation, padding, batch_tile=8):
    """TemporalBlock forward.  All tensors in native PyTorch layouts:
       x:(B,Cin,L)  w1:(Cout,Cin,K)  w2:(Cout,Cout,K)  wd:(Cout,Cin) or None
       biases:(Cout,).  Returns (B,Cout,L)."""
    B, c_in, L = x.shape
    c_out = w1.shape[0]
    K = kernel_size
    if padding != (K - 1) * dilation:
        raise ValueError("TemporalBlock requires padding == (kernel_size-1)*dilation")
    has_downsample = wd is not None
    if not has_downsample and c_in != c_out:
        raise ValueError("identity residual requires n_inputs == n_outputs")

    # Fold the K taps into one contraction axis (tiny weight reshapes only; the
    # activations stay in NCL -> no transposes and no HBM padding pass).
    w1s = jnp.transpose(w1, (0, 2, 1)).reshape(c_out, K * c_in).astype(jnp.float32)
    w2s = jnp.transpose(w2, (0, 2, 1)).reshape(c_out, K * c_out).astype(jnp.float32)
    b1r = b1.reshape(c_out, 1).astype(jnp.float32)
    b2r = b2.reshape(c_out, 1).astype(jnp.float32)

    x = x.astype(jnp.float32)
    bt = max(1, min(batch_tile, B))
    pad_b = (-B) % bt
    if pad_b:                                             # make the batch grid even
        x = jnp.pad(x, ((0, pad_b), (0, 0), (0, 0)))
    bp = B + pad_b

    kernel = functools.partial(_temporal_block_kernel, kernel_size=K,
                               dilation=dilation, has_downsample=has_downsample)

    in_specs = [
        pl.BlockSpec((bt, c_in, L), lambda i: (i, 0, 0)),
        pl.BlockSpec((c_out, K * c_in), lambda i: (0, 0)),
        pl.BlockSpec((c_out, 1), lambda i: (0, 0)),
        pl.BlockSpec((c_out, K * c_out), lambda i: (0, 0)),
        pl.BlockSpec((c_out, 1), lambda i: (0, 0)),
    ]
    args = [x, w1s, b1r, w2s, b2r]
    if has_downsample:
        in_specs += [pl.BlockSpec((c_out, c_in), lambda i: (0, 0)),
                     pl.BlockSpec((c_out, 1), lambda i: (0, 0))]
        args += [wd.astype(jnp.float32), bd.reshape(c_out, 1).astype(jnp.float32)]

    out = pl.pallas_call(
        kernel,
        out_shape=jax.ShapeDtypeStruct((bp, c_out, L), jnp.float32),
        grid_spec=pltpu.PrefetchScalarGridSpec(
            num_scalar_prefetch=0,
            grid=(bp // bt,),
            in_specs=in_specs,
            out_specs=pl.BlockSpec((bt, c_out, L), lambda i: (i, 0, 0)),
            scratch_shapes=[pltpu.VMEM((K * c_in, L), jnp.float32),
                            pltpu.VMEM((K * c_out, L), jnp.float32)],
        ),
        compiler_params=pltpu.CompilerParams(dimension_semantics=("parallel",)),
    )(*args)
    return out[:B] if pad_b else out


# ----------------------- reference (plain JAX, NCL) ------------------------ #
def _ref_forward(x, w1, b1, w2, b2, wd=None, bd=None, *, dilation, padding):
    def conv1d(inp, w, b):
        y = jax.lax.conv_general_dilated(
            inp, w, window_strides=(1,), padding=[(padding, padding)],
            rhs_dilation=(dilation,), dimension_numbers=('NCH', 'OIH', 'NCH'))
        return y + b[None, :, None]

    out = jnp.maximum(conv1d(x, w1, b1)[:, :, :-padding], 0.0)
    out = jnp.maximum(conv1d(out, w2, b2)[:, :, :-padding], 0.0)
    if wd is None:
        res = x
    else:
        res = jax.lax.conv_general_dilated(
            x, wd[:, :, None], window_strides=(1,), padding=[(0, 0)],
            dimension_numbers=('NCH', 'OIH', 'NCH')) + bd[None, :, None]
    return jnp.maximum(out + res, 0.0)


def _weight_norm(v, g):
    # PyTorch weight_norm, dim=0: w = g * v / ||v||  (norm over (Cin, K) per out-channel)
    nrm = jnp.sqrt(jnp.sum(v * v, axis=(1, 2), keepdims=True))
    return g[:, None, None] * v / nrm


def _make_params(key, c_in, c_out, K):
    ks = jax.random.split(key, 8)
    v1 = 0.01 * jax.random.normal(ks[0], (c_out, c_in, K), jnp.float32)
    g1 = 1.0 + 0.1 * jax.random.normal(ks[1], (c_out,), jnp.float32)
    v2 = 0.01 * jax.random.normal(ks[2], (c_out, c_out, K), jnp.float32)
    g2 = 1.0 + 0.1 * jax.random.normal(ks[3], (c_out,), jnp.float32)
    w1 = _weight_norm(v1, g1)
    w2 = _weight_norm(v2, g2)
    b1 = 0.01 * jax.random.normal(ks[4], (c_out,), jnp.float32)
    b2 = 0.01 * jax.random.normal(ks[5], (c_out,), jnp.float32)
    wd = 0.01 * jax.random.normal(ks[6], (c_out, c_in), jnp.float32)
    bd = 0.01 * jax.random.normal(ks[7], (c_out,), jnp.float32)
    return w1, b1, w2, b2, wd, bd


if __name__ == "__main__":
    root = jax.random.PRNGKey(0)
    k1_in, k1_par, k2_in, k2_par = jax.random.split(root, 4)

    # --- case 1: n_inputs != n_outputs -> 1x1 downsample residual ---------------
    B, L, c_in, c_out, K, dil = 2, 128, 4, 8, 3, 2
    pad = (K - 1) * dil
    w1, b1, w2, b2, wd, bd = _make_params(k1_par, c_in, c_out, K)
    x = jax.random.normal(k1_in, (B, c_in, L), jnp.float32)            # NCL input
    y = jax.block_until_ready(temporal_block_forward(
        x, w1, b1, w2, b2, wd, bd, kernel_size=K, dilation=dil, padding=pad))
    y_ref = _ref_forward(x, w1, b1, w2, b2, wd, bd, dilation=dil, padding=pad)
    assert y.shape == (B, c_out, L)
    assert jnp.allclose(y, y_ref, atol=1e-4, rtol=1e-4), "case1 mismatch vs reference"

    # --- case 2: n_inputs == n_outputs -> identity residual, uneven batch tile --
    B2, L2, c2, K2, dil2 = 3, 128, 8, 2, 1
    pad2 = (K2 - 1) * dil2
    w1b, b1b, w2b, b2b, _, _ = _make_params(k2_par, c2, c2, K2)
    x2 = jax.random.normal(k2_in, (B2, c2, L2), jnp.float32)
    y2 = jax.block_until_ready(temporal_block_forward(
        x2, w1b, b1b, w2b, b2b, None, None,
        kernel_size=K2, dilation=dil2, padding=pad2, batch_tile=2))
    y2_ref = _ref_forward(x2, w1b, b1b, w2b, b2b, None, None,
                          dilation=dil2, padding=pad2)
    assert y2.shape == (B2, c2, L2)
    assert jnp.allclose(y2, y2_ref, atol=1e-4, rtol=1e-4), "case2 mismatch vs reference"

    print("KERNEL_OK")
</pallas_src>

<mosaic_0001>
module attributes {stable_mosaic.version = 11 : i64} {
  func.func @_temporal_block_kernel(%arg0: i32, %arg1: memref<2x4x128xf32, #tpu.memory_space<vmem>>, %arg2: memref<8x12xf32, #tpu.memory_space<vmem>>, %arg3: memref<8x1xf32, #tpu.memory_space<vmem>>, %arg4: memref<8x24xf32, #tpu.memory_space<vmem>>, %arg5: memref<8x1xf32, #tpu.memory_space<vmem>>, %arg6: memref<8x4xf32, #tpu.memory_space<vmem>>, %arg7: memref<8x1xf32, #tpu.memory_space<vmem>>, %arg8: memref<2x8x128xf32, #tpu.memory_space<vmem>>, %arg9: memref<12x128xf32, #tpu.memory_space<vmem>>, %arg10: memref<24x128xf32, #tpu.memory_space<vmem>>) attributes {dimension_semantics = [#tpu.dimension_semantics<parallel>], iteration_bounds = array<i64: 1>, scalar_prefetch = 0 : i64, scratch_operands = 2 : i64, tpu.core_type = #tpu.core_type<tc>, window_params = [{transform_indices = @transform_0, window_bounds = array<i64: 2, 4, 128>}, {pipeline_mode = #tpu.pipeline_mode<synchronous>, transform_indices = @transform_1, window_bounds = array<i64: 8, 12>}, {pipeline_mode = #tpu.pipeline_mode<synchronous>, transform_indices = @transform_2, window_bounds = array<i64: 8, 1>}, {pipeline_mode = #tpu.pipeline_mode<synchronous>, transform_indices = @transform_3, window_bounds = array<i64: 8, 24>}, {pipeline_mode = #tpu.pipeline_mode<synchronous>, transform_indices = @transform_4, window_bounds = array<i64: 8, 1>}, {pipeline_mode = #tpu.pipeline_mode<synchronous>, transform_indices = @transform_5, window_bounds = array<i64: 8, 4>}, {pipeline_mode = #tpu.pipeline_mode<synchronous>, transform_indices = @transform_6, window_bounds = array<i64: 8, 1>}, {transform_indices = @transform_7, window_bounds = array<i64: 2, 8, 128>}]} {
    %c0 = arith.constant 0 : index
    %c0_0 = arith.constant 0 : index
    %0 = vector.load %arg2[%c0, %c0_0] : memref<8x12xf32, #tpu.memory_space<vmem>>, vector<8x12xf32>
    %c0_1 = arith.constant 0 : index
    %c0_2 = arith.constant 0 : index
    %1 = vector.load %arg4[%c0_1, %c0_2] : memref<8x24xf32, #tpu.memory_space<vmem>>, vector<8x24xf32>
    %c0_3 = arith.constant 0 : index
    %c0_4 = arith.constant 0 : index
    %2 = vector.load %arg3[%c0_3, %c0_4] : memref<8x1xf32, #tpu.memory_space<vmem>>, vector<8x1xf32>
    %c0_5 = arith.constant 0 : index
    %c0_6 = arith.constant 0 : index
    %3 = vector.load %arg5[%c0_5, %c0_6] : memref<8x1xf32, #tpu.memory_space<vmem>>, vector<8x1xf32>
    %c0_7 = arith.constant 0 : index
    %c0_8 = arith.constant 0 : index
    %4 = vector.load %arg6[%c0_7, %c0_8] : memref<8x4xf32, #tpu.memory_space<vmem>>, vector<8x4xf32>
    %c0_9 = arith.constant 0 : index
    %c0_10 = arith.constant 0 : index
    %5 = vector.load %arg7[%c0_9, %c0_10] : memref<8x1xf32, #tpu.memory_space<vmem>>, vector<8x1xf32>
    %6 = tpu.iota {dimensions = array<i32: 1>} : vector<4x128xi32>
    %7 = tpu.iota {dimensions = array<i32: 1>} : vector<8x128xi32>
    %c0_11 = arith.constant 0 : index
    %c0_12 = arith.constant 0 : index
    %c0_13 = arith.constant 0 : index
    %8 = vector.load %arg1[%c0_11, %c0_12, %c0_13] : memref<2x4x128xf32, #tpu.memory_space<vmem>>, vector<1x4x128xf32>
    %9 = vector.shape_cast %8 : vector<1x4x128xf32> to vector<4x128xf32>
    %c4_i32 = arith.constant 4 : i32
    %10 = vector.broadcast %c4_i32 : i32 to vector<4x128xi32>
    %11 = arith.cmpi sge, %6, %10 : vector<4x128xi32>
    %c4_i32_14 = arith.constant 4 : i32
    %12 = tpu.dynamic_rotate %9 by %c4_i32_14 dim 1 : vector<4x128xf32>, i32 -> vector<4x128xf32>
    %cst = arith.constant 0.000000e+00 : f32
    %13 = vector.broadcast %cst : f32 to vector<4x128xf32>
    %14 = arith.select %11, %12, %13 : vector<4x128xi1>, vector<4x128xf32>
    %c0_15 = arith.constant 0 : index
    %c0_16 = arith.constant 0 : index
    %15 = vector.load %arg9[%c0_15, %c0_16] : memref<12x128xf32, #tpu.memory_space<vmem>>, vector<4x128xf32>
    tpu.vector_store %arg9[%c0_15, %c0_16], %14 {strides = array<i32>} : memref<12x128xf32, #tpu.memory_space<vmem>>, vector<4x128xf32>,
    %c2_i32 = arith.constant 2 : i32
    %16 = vector.broadcast %c2_i32 : i32 to vector<4x128xi32>
    %17 = arith.cmpi sge, %6, %16 : vector<4x128xi32>
    %c2_i32_17 = arith.constant 2 : i32
    %18 = tpu.dynamic_rotate %9 by %c2_i32_17 dim 1 : vector<4x128xf32>, i32 -> vector<4x128xf32>
    %cst_18 = arith.constant 0.000000e+00 : f32
    %19 = vector.broadcast %cst_18 : f32 to vector<4x128xf32>
    %20 = arith.select %17, %18, %19 : vector<4x128xi1>, vector<4x128xf32>
    %c4 = arith.constant 4 : index
    %c0_19 = arith.constant 0 : index
    %21 = vector.load %arg9[%c4, %c0_19] : memref<12x128xf32, #tpu.memory_space<vmem>>, vector<4x128xf32>
    tpu.vector_store %arg9[%c4, %c0_19], %20 {strides = array<i32>} : memref<12x128xf32, #tpu.memory_space<vmem>>, vector<4x128xf32>,
    %c8 = arith.constant 8 : index
    %c0_20 = arith.constant 0 : index
    %22 = vector.load %arg9[%c8, %c0_20] : memref<12x128xf32, #tpu.memory_space<vmem>>, vector<4x128xf32>
    tpu.vector_store %arg9[%c8, %c0_20], %9 {strides = array<i32>} : memref<12x128xf32, #tpu.memory_space<vmem>>, vector<4x128xf32>,
    %c0_21 = arith.constant 0 : index
    %c0_22 = arith.constant 0 : index
    %23 = vector.load %arg9[%c0_21, %c0_22] : memref<12x128xf32, #tpu.memory_space<vmem>>, vector<12x128xf32>
    %cst_23 = arith.constant dense<0.000000e+00> : vector<8x128xf32>
    %24 = tpu.matmul %0, %23, %cst_23 {dimension_numbers = #tpu.dot_dimension_numbers<[1], [0], [0], [1], [0, 0, 1, 1], [], []>} : vector<8x12xf32>, vector<12x128xf32>, vector<8x128xf32> -> vector<8x128xf32>
    %25 = vector.broadcast %2 : vector<8x1xf32> to vector<8x128xf32>
    %26 = arith.addf %24, %25 : vector<8x128xf32>
    %cst_24 = arith.constant 0.000000e+00 : f32
    %27 = vector.broadcast %cst_24 : f32 to vector<8x128xf32>
    %28 = arith.maximumf %26, %27 : vector<8x128xf32>
    %c4_i32_25 = arith.constant 4 : i32
    %29 = vector.broadcast %c4_i32_25 : i32 to vector<8x128xi32>
    %30 = arith.cmpi sge, %7, %29 : vector<8x128xi32>
    %c4_i32_26 = arith.constant 4 : i32
    %31 = tpu.dynamic_rotate %28 by %c4_i32_26 dim 1 : vector<8x128xf32>, i32 -> vector<8x128xf32>
    %cst_27 = arith.constant 0.000000e+00 : f32
    %32 = vector.broadcast %cst_27 : f32 to vector<8x128xf32>
    %33 = arith.select %30, %31, %32 : vector<8x128xi1>, vector<8x128xf32>
    %c0_28 = arith.constant 0 : index
    %c0_29 = arith.constant 0 : index
    %34 = vector.load %arg10[%c0_28, %c0_29] : memref<24x128xf32, #tpu.memory_space<vmem>>, vector<8x128xf32>
    tpu.vector_store %arg10[%c0_28, %c0_29], %33 {strides = array<i32>} : memref<24x128xf32, #tpu.memory_space<vmem>>, vector<8x128xf32>,
    %c2_i32_30 = arith.constant 2 : i32
    %35 = vector.broadcast %c2_i32_30 : i32 to vector<8x128xi32>
    %36 = arith.cmpi sge, %7, %35 : vector<8x128xi32>
    %c2_i32_31 = arith.constant 2 : i32
    %37 = tpu.dynamic_rotate %28 by %c2_i32_31 dim 1 : vector<8x128xf32>, i32 -> vector<8x128xf32>
    %cst_32 = arith.constant 0.000000e+00 : f32
    %38 = vector.broadcast %cst_32 : f32 to vector<8x128xf32>
    %39 = arith.select %36, %37, %38 : vector<8x128xi1>, vector<8x128xf32>
    %c8_33 = arith.constant 8 : index
    %c0_34 = arith.constant 0 : index
    %40 = vector.load %arg10[%c8_33, %c0_34] : memref<24x128xf32, #tpu.memory_space<vmem>>, vector<8x128xf32>
    tpu.vector_store %arg10[%c8_33, %c0_34], %39 {strides = array<i32>} : memref<24x128xf32, #tpu.memory_space<vmem>>, vector<8x128xf32>,
    %c16 = arith.constant 16 : index
    %c0_35 = arith.constant 0 : index
    %41 = vector.load %arg10[%c16, %c0_35] : memref<24x128xf32, #tpu.memory_space<vmem>>, vector<8x128xf32>
    tpu.vector_store %arg10[%c16, %c0_35], %28 {strides = array<i32>} : memref<24x128xf32, #tpu.memory_space<vmem>>, vector<8x128xf32>,
    %c0_36 = arith.constant 0 : index
    %c0_37 = arith.constant 0 : index
    %42 = vector.load %arg10[%c0_36, %c0_37] : memref<24x128xf32, #tpu.memory_space<vmem>>, vector<24x128xf32>
    %cst_38 = arith.constant dense<0.000000e+00> : vector<8x128xf32>
    %43 = tpu.matmul %1, %42, %cst_38 {dimension_numbers = #tpu.dot_dimension_numbers<[1], [0], [0], [1], [0, 0, 1, 1], [], []>} : vector<8x24xf32>, vector<24x128xf32>, vector<8x128xf32> -> vector<8x128xf32>
    %44 = vector.broadcast %3 : vector<8x1xf32> to vector<8x128xf32>
    %45 = arith.addf %43, %44 : vector<8x128xf32>
    %cst_39 = arith.constant 0.000000e+00 : f32
    %46 = vector.broadcast %cst_39 : f32 to vector<8x128xf32>
    %47 = arith.maximumf %45, %46 : vector<8x128xf32>
    %cst_40 = arith.constant dense<0.000000e+00> : vector<8x128xf32>
    %48 = tpu.matmul %4, %9, %cst_40 {dimension_numbers = #tpu.dot_dimension_numbers<[1], [0], [0], [1], [0, 0, 1, 1], [], []>} : vector<8x4xf32>, vector<4x128xf32>, vector<8x128xf32> -> vector<8x128xf32>
    %49 = vector.broadcast %5 : vector<8x1xf32> to vector<8x128xf32>
    %50 = arith.addf %48, %49 : vector<8x128xf32>
    %51 = arith.addf %47, %50 : vector<8x128xf32>
    %cst_41 = arith.constant 0.000000e+00 : f32
    %52 = vector.broadcast %cst_41 : f32 to vector<8x128xf32>
    %53 = arith.maximumf %51, %52 : vector<8x128xf32>
    %c0_42 = arith.constant 0 : index
    %c0_43 = arith.constant 0 : index
    %c0_44 = arith.constant 0 : index
    %54 = vector.load %arg8[%c0_42, %c0_43, %c0_44] : memref<2x8x128xf32, #tpu.memory_space<vmem>>, vector<1x8x128xf32>
    %55 = vector.shape_cast %54 : vector<1x8x128xf32> to vector<8x128xf32>
    %56 = vector.shape_cast %53 : vector<8x128xf32> to vector<1x8x128xf32>
    tpu.vector_store %arg8[%c0_42, %c0_43, %c0_44], %56 {strides = array<i32>} : memref<2x8x128xf32, #tpu.memory_space<vmem>>, vector<1x8x128xf32>,
    %c1 = arith.constant 1 : index
    %c0_45 = arith.constant 0 : index
    %c0_46 = arith.constant 0 : index
    %57 = vector.load %arg1[%c1, %c0_45, %c0_46] : memref<2x4x128xf32, #tpu.memory_space<vmem>>, vector<1x4x128xf32>
    %58 = vector.shape_cast %57 : vector<1x4x128xf32> to vector<4x128xf32>
    %c4_i32_47 = arith.constant 4 : i32
    %59 = vector.broadcast %c4_i32_47 : i32 to vector<4x128xi32>
    %60 = arith.cmpi sge, %6, %59 : vector<4x128xi32>
    %c4_i32_48 = arith.constant 4 : i32
    %61 = tpu.dynamic_rotate %58 by %c4_i32_48 dim 1 : vector<4x128xf32>, i32 -> vector<4x128xf32>
    %cst_49 = arith.constant 0.000000e+00 : f32
    %62 = vector.broadcast %cst_49 : f32 to vector<4x128xf32>
    %63 = arith.select %60, %61, %62 : vector<4x128xi1>, vector<4x128xf32>
    %c0_50 = arith.constant 0 : index
    %c0_51 = arith.constant 0 : index
    %64 = vector.load %arg9[%c0_50, %c0_51] : memref<12x128xf32, #tpu.memory_space<vmem>>, vector<4x128xf32>
    tpu.vector_store %arg9[%c0_50, %c0_51], %63 {strides = array<i32>} : memref<12x128xf32, #tpu.memory_space<vmem>>, vector<4x128xf32>,
    %c2_i32_52 = arith.constant 2 : i32
    %65 = vector.broadcast %c2_i32_52 : i32 to vector<4x128xi32>
    %66 = arith.cmpi sge, %6, %65 : vector<4x128xi32>
    %c2_i32_53 = arith.constant 2 : i32
    %67 = tpu.dynamic_rotate %58 by %c2_i32_53 dim 1 : vector<4x128xf32>, i32 -> vector<4x128xf32>
    %cst_54 = arith.constant 0.000000e+00 : f32
    %68 = vector.broadcast %cst_54 : f32 to vector<4x128xf32>
    %69 = arith.select %66, %67, %68 : vector<4x128xi1>, vector<4x128xf32>
    %c4_55 = arith.constant 4 : index
    %c0_56 = arith.constant 0 : index
    %70 = vector.load %arg9[%c4_55, %c0_56] : memref<12x128xf32, #tpu.memory_space<vmem>>, vector<4x128xf32>
    tpu.vector_store %arg9[%c4_55, %c0_56], %69 {strides = array<i32>} : memref<12x128xf32, #tpu.memory_space<vmem>>, vector<4x128xf32>,
    %c8_57 = arith.constant 8 : index
    %c0_58 = arith.constant 0 : index
    %71 = vector.load %arg9[%c8_57, %c0_58] : memref<12x128xf32, #tpu.memory_space<vmem>>, vector<4x128xf32>
    tpu.vector_store %arg9[%c8_57, %c0_58], %58 {strides = array<i32>} : memref<12x128xf32, #tpu.memory_space<vmem>>, vector<4x128xf32>,
    %c0_59 = arith.constant 0 : index
    %c0_60 = arith.constant 0 : index
    %72 = vector.load %arg9[%c0_59, %c0_60] : memref<12x128xf32, #tpu.memory_space<vmem>>, vector<12x128xf32>
    %cst_61 = arith.constant dense<0.000000e+00> : vector<8x128xf32>
    %73 = tpu.matmul %0, %72, %cst_61 {dimension_numbers = #tpu.dot_dimension_numbers<[1], [0], [0], [1], [0, 0, 1, 1], [], []>} : vector<8x12xf32>, vector<12x128xf32>, vector<8x128xf32> -> vector<8x128xf32>
    %74 = vector.broadcast %2 : vector<8x1xf32> to vector<8x128xf32>
    %75 = arith.addf %73, %74 : vector<8x128xf32>
    %cst_62 = arith.constant 0.000000e+00 : f32
    %76 = vector.broadcast %cst_62 : f32 to vector<8x128xf32>
    %77 = arith.maximumf %75, %76 : vector<8x128xf32>
    %c4_i32_63 = arith.constant 4 : i32
    %78 = vector.broadcast %c4_i32_63 : i32 to vector<8x128xi32>
    %79 = arith.cmpi sge, %7, %78 : vector<8x128xi32>
    %c4_i32_64 = arith.constant 4 : i32
    %80 = tpu.dynamic_rotate %77 by %c4_i32_64 dim 1 : vector<8x128xf32>, i32 -> vector<8x128xf32>
    %cst_65 = arith.constant 0.000000e+00 : f32
    %81 = vector.broadcast %cst_65 : f32 to vector<8x128xf32>
    %82 = arith.select %79, %80, %81 : vector<8x128xi1>, vector<8x128xf32>
    %c0_66 = arith.constant 0 : index
    %c0_67 = arith.constant 0 : index
    %83 = vector.load %arg10[%c0_66, %c0_67] : memref<24x128xf32, #tpu.memory_space<vmem>>, vector<8x128xf32>
    tpu.vector_store %arg10[%c0_66, %c0_67], %82 {strides = array<i32>} : memref<24x128xf32, #tpu.memory_space<vmem>>, vector<8x128xf32>,
    %c2_i32_68 = arith.constant 2 : i32
    %84 = vector.broadcast %c2_i32_68 : i32 to vector<8x128xi32>
    %85 = arith.cmpi sge, %7, %84 : vector<8x128xi32>
    %c2_i32_69 = arith.constant 2 : i32
    %86 = tpu.dynamic_rotate %77 by %c2_i32_69 dim 1 : vector<8x128xf32>, i32 -> vector<8x128xf32>
    %cst_70 = arith.constant 0.000000e+00 : f32
    %87 = vector.broadcast %cst_70 : f32 to vector<8x128xf32>
    %88 = arith.select %85, %86, %87 : vector<8x128xi1>, vector<8x128xf32>
    %c8_71 = arith.constant 8 : index
    %c0_72 = arith.constant 0 : index
    %89 = vector.load %arg10[%c8_71, %c0_72] : memref<24x128xf32, #tpu.memory_space<vmem>>, vector<8x128xf32>
    tpu.vector_store %arg10[%c8_71, %c0_72], %88 {strides = array<i32>} : memref<24x128xf32, #tpu.memory_space<vmem>>, vector<8x128xf32>,
    %c16_73 = arith.constant 16 : index
    %c0_74 = arith.constant 0 : index
    %90 = vector.load %arg10[%c16_73, %c0_74] : memref<24x128xf32, #tpu.memory_space<vmem>>, vector<8x128xf32>
    tpu.vector_store %arg10[%c16_73, %c0_74], %77 {strides = array<i32>} : memref<24x128xf32, #tpu.memory_space<vmem>>, vector<8x128xf32>,
    %c0_75 = arith.constant 0 : index
    %c0_76 = arith.constant 0 : index
    %91 = vector.load %arg10[%c0_75, %c0_76] : memref<24x128xf32, #tpu.memory_space<vmem>>, vector<24x128xf32>
    %cst_77 = arith.constant dense<0.000000e+00> : vector<8x128xf32>
    %92 = tpu.matmul %1, %91, %cst_77 {dimension_numbers = #tpu.dot_dimension_numbers<[1], [0], [0], [1], [0, 0, 1, 1], [], []>} : vector<8x24xf32>, vector<24x128xf32>, vector<8x128xf32> -> vector<8x128xf32>
    %93 = vector.broadcast %3 : vector<8x1xf32> to vector<8x128xf32>
    %94 = arith.addf %92, %93 : vector<8x128xf32>
    %cst_78 = arith.constant 0.000000e+00 : f32
    %95 = vector.broadcast %cst_78 : f32 to vector<8x128xf32>
    %96 = arith.maximumf %94, %95 : vector<8x128xf32>
    %cst_79 = arith.constant dense<0.000000e+00> : vector<8x128xf32>
    %97 = tpu.matmul %4, %58, %cst_79 {dimension_numbers = #tpu.dot_dimension_numbers<[1], [0], [0], [1], [0, 0, 1, 1], [], []>} : vector<8x4xf32>, vector<4x128xf32>, vector<8x128xf32> -> vector<8x128xf32>
    %98 = vector.broadcast %5 : vector<8x1xf32> to vector<8x128xf32>
    %99 = arith.addf %97, %98 : vector<8x128xf32>
    %100 = arith.addf %96, %99 : vector<8x128xf32>
    %cst_80 = arith.constant 0.000000e+00 : f32
    %101 = vector.broadcast %cst_80 : f32 to vector<8x128xf32>
    %102 = arith.maximumf %100, %101 : vector<8x128xf32>
    %c1_81 = arith.constant 1 : index
    %c0_82 = arith.constant 0 : index
    %c0_83 = arith.constant 0 : index
    %103 = vector.load %arg8[%c1_81, %c0_82, %c0_83] : memref<2x8x128xf32, #tpu.memory_space<vmem>>, vector<1x8x128xf32>
    %104 = vector.shape_cast %103 : vector<1x8x128xf32> to vector<8x128xf32>
    %105 = vector.shape_cast %102 : vector<8x128xf32> to vector<1x8x128xf32>
    tpu.vector_store %arg8[%c1_81, %c0_82, %c0_83], %105 {strides = array<i32>} : memref<2x8x128xf32, #tpu.memory_space<vmem>>, vector<1x8x128xf32>,
    return
  }
  func.func @transform_0(%arg0: i32) -> (i32, i32, i32) {
    %c0_i32 = arith.constant 0 : i32
    %c0_i32_0 = arith.constant 0 : i32
    %c0_i32_1 = arith.constant 0 : i32
    return %arg0, %c0_i32, %c0_i32_0 : i32, i32, i32
  }
  func.func @transform_1(%arg0: i32) -> (i32, i32) {
    %c0_i32 = arith.constant 0 : i32
    %c0_i32_0 = arith.constant 0 : i32
    %c0_i32_1 = arith.constant 0 : i32
    return %c0_i32, %c0_i32_0 : i32, i32
  }
  func.func @transform_2(%arg0: i32) -> (i32, i32) {
    %c0_i32 = arith.constant 0 : i32
    %c0_i32_0 = arith.constant 0 : i32
    %c0_i32_1 = arith.constant 0 : i32
    return %c0_i32, %c0_i32_0 : i32, i32
  }
  func.func @transform_3(%arg0: i32) -> (i32, i32) {
    %c0_i32 = arith.constant 0 : i32
    %c0_i32_0 = arith.constant 0 : i32
    %c0_i32_1 = arith.constant 0 : i32
    return %c0_i32, %c0_i32_0 : i32, i32
  }
  func.func @transform_4(%arg0: i32) -> (i32, i32) {
    %c0_i32 = arith.constant 0 : i32
    %c0_i32_0 = arith.constant 0 : i32
    %c0_i32_1 = arith.constant 0 : i32
    return %c0_i32, %c0_i32_0 : i32, i32
  }
  func.func @transform_5(%arg0: i32) -> (i32, i32) {
    %c0_i32 = arith.constant 0 : i32
    %c0_i32_0 = arith.constant 0 : i32
    %c0_i32_1 = arith.constant 0 : i32
    return %c0_i32, %c0_i32_0 : i32, i32
  }
  func.func @transform_6(%arg0: i32) -> (i32, i32) {
    %c0_i32 = arith.constant 0 : i32
    %c0_i32_0 = arith.constant 0 : i32
    %c0_i32_1 = arith.constant 0 : i32
    return %c0_i32, %c0_i32_0 : i32, i32
  }
  func.func @transform_7(%arg0: i32) -> (i32, i32, i32) {
    %c0_i32 = arith.constant 0 : i32
    %c0_i32_0 = arith.constant 0 : i32
    %c0_i32_1 = arith.constant 0 : i32
    return %arg0, %c0_i32, %c0_i32_0 : i32, i32, i32
  }
}

</mosaic_0001>

<llo_original>
// kernel: tpu_custom_call.1
$region0: #{tpu_custom_call.1}
  #allocation0 [shape = 'u32[]', space=smem, size = 0x4, offset = 0x4, fixed_abs, tag = 'smem constant byte address 0x4 - core index']
  #allocation1 [shape = 'u32[144,128]{1,0:T(1,128)}', space=vmem, size = 0x12000, scoped, tag = 'internal scratch']
  #allocation2 [shape = 'f32[12,128]{1,0:T(8,128)}', space=vmem, size = 0x2000, scoped, tag = 'scratch operand']
  #allocation3 [shape = 'f32[24,128]{1,0:T(8,128)}', space=vmem, size = 0x3000, scoped, tag = 'scratch operand']
  %s0 = inlined_call_operand.vmem [shape: f32[2,4,128], index: 0, kind: input, shape index: {}]
  %s1 = inlined_call_operand.vmem [shape: f32[8,12], index: 1, kind: input, shape index: {}]
  %s2 = inlined_call_operand.vmem [shape: f32[8,1], index: 2, kind: input, shape index: {}]
  %s3 = inlined_call_operand.vmem [shape: f32[8,24], index: 3, kind: input, shape index: {}]
  %s4 = inlined_call_operand.vmem [shape: f32[8,1], index: 4, kind: input, shape index: {}]
  %s5 = inlined_call_operand.vmem [shape: f32[8,4], index: 5, kind: input, shape index: {}]
  %s6 = inlined_call_operand.vmem [shape: f32[8,1], index: 6, kind: input, shape index: {}]
  %s7 = inlined_call_operand.hbm [shape: f32[2,8,128], index: 7, kind: output, shape index: {}]
  %s8 = sld [smem:[#allocation0]]
  $region38: #{tpu_custom_call.1} parent=0
    _
  %s10 = ssub.s32 1, %s8
  %s11 = scalar_select 0, %s10, %s8
  $region1: #{tpu_custom_call.1} parent=0
    #allocation4 [shape = 'u8[8192]{0}', space=vmem, size = 0x2000, scoped, tag = 'output window, operand 0, single buffered']
    #allocation5 [shape = 's32[1]{0}', space=sflag, size = 0x4, scoped, tag = 'scoped memory for tpu_custom_call.1']
    %12 = vsyncpa [#allocation5], 0
    // Predicated region
    $region2: #{tpu_custom_call.1} parent=1 // pred_check
      _
    $region3: #{tpu_custom_call.1} parent=1 // pred_check_branch
      %14 = sbr.rel (0) target = $region5
    $region4: #{tpu_custom_call.1} parent=1 // pred_region
      _
    $region5: #{tpu_custom_call.1} parent=1 // pred_fallthru
      _
    // Predicated region
    $region6: #{tpu_custom_call.1} parent=1 // pred_check
      _
    $region7: #{tpu_custom_call.1} parent=1 // pred_check_branch
      %16 = sbr.rel (0) target = $region9
    $region8: #{tpu_custom_call.1} parent=1 // pred_region
      _
    $region9: #{tpu_custom_call.1} parent=1 // pred_fallthru
      _
    // Predicated region
    $region10: #{tpu_custom_call.1} parent=1 // pred_check
      _
    $region11: #{tpu_custom_call.1} parent=1 // pred_check_branch
      %18 = sbr.rel (0) target = $region13
    $region12: #{tpu_custom_call.1} parent=1 // pred_region
      _
    $region13: #{tpu_custom_call.1} parent=1 // pred_fallthru
      _
    // Predicated region
    $region14: #{tpu_custom_call.1} parent=1 // pred_check
      _
    $region15: #{tpu_custom_call.1} parent=1 // pred_check_branch
      %20 = sbr.rel (0) target = $region17
    $region16: #{tpu_custom_call.1} parent=1 // pred_region
      _
    $region17: #{tpu_custom_call.1} parent=1 // pred_fallthru
      _
    // Predicated region
    $region18: #{tpu_custom_call.1} parent=1 // pred_check
      _
    $region19: #{tpu_custom_call.1} parent=1 // pred_check_branch
      %22 = sbr.rel (0) target = $region21
    $region20: #{tpu_custom_call.1} parent=1 // pred_region
      _
    $region21: #{tpu_custom_call.1} parent=1 // pred_fallthru
      _
    // Predicated region
    $region22: #{tpu_custom_call.1} parent=1 // pred_check
      _
    $region23: #{tpu_custom_call.1} parent=1 // pred_check_branch
      %24 = sbr.rel (0) target = $region25
    $region24: #{tpu_custom_call.1} parent=1 // pred_region
      _
    $region25: #{tpu_custom_call.1} parent=1 // pred_fallthru
      _
    // Predicated region
    $region26: #{tpu_custom_call.1} parent=1 // pred_check
      _
    $region27: #{tpu_custom_call.1} parent=1 // pred_check_branch
      %26 = sbr.rel (0) target = $region29
    $region28: #{tpu_custom_call.1} parent=1 // pred_region
      _
    $region29: #{tpu_custom_call.1} parent=1 // pred_fallthru
      _
    %v27 = vld [vmem:[%s1] sm:$0xff]
    %v28 = vld [vmem:[%s3] sm:$0xff]
    %v29 = vld [vmem:[%s2] sm:$0xff]
    %v30 = vld [vmem:[%s4] sm:$0xff]
    %v31 = vld [vmem:[%s5] sm:$0xff]
    %v32 = vld [vmem:[%s6] sm:$0xff]
    %v33 = vlaneseq
    %v34 = vand.u32 %v33, 127
    %v35 = vld [vmem:[%s0] sm:$0xf]
    %vm36 = vcmp.ge.s32.totalorder %v34, 4
    %37 = vrot.lane.b32.xlu0 %v35, 4
    %v38 = vpop.permute.xlu0 %37
    %v39 = vsel %vm36, %v38, 0.0
    %40 = vst [vmem:[#allocation2] sm:$0xf] %v39
    %vm41 = vcmp.ge.s32.totalorder %v34, 2
    %42 = vrot.lane.b32.xlu0 %v35, 2
    %v43 = vpop.permute.xlu0 %42
    %v44 = vsel %vm41, %v43, 0.0
    %45 = vst [vmem:[#allocation2 + $0x4] sm:$0xf] %v44
    %46 = vst [vmem:[#allocation2 + $0x8] sm:$0xf] %v35
    %v47 = vld [vmem:[#allocation2] sm:$0xff]
    %v48 = vld [vmem:[#allocation2 + $0x8] sm:$0xf]
    %50 = vset.pattern.permute.xlu0 0
    %51 = vperm.xlu0 %50, %v29
    %v52 = vpop.permute.xlu0 %51
    %vm54 = vcmask 97280
    %v56 = vsel %vm54, %v27, 0
    %vm58 = vcmask 1043456
    %v60 = vsel %vm58, %v48, 0
    %62 = vmatprep.subr.mxu0 0.0
    %63 = vmatpush1.msra.mxu0 %v47
    %64 = vmatprep.subr.mxu0 0.0
    %65 = vmatpush1.msra.mxu0 %v60
    %66 = vmatprep.subr.mxu0 0.0
    %67 = vmatpush1.msra.mxu0 0.0
    %68 = vmatprep.subr.mxu0 0.0
    %69 = vmatpush1.msra.mxu0 0.0
    %70 = vmatprep.subr.mxu0 0.0
    %71 = vmatpush1.msra.mxu0 0.0
    %72 = vmatprep.subr.mxu0 0.0
    %73 = vmatpush1.msra.mxu0 0.0
    %74 = vmatprep.subr.mxu0 0.0
    %75 = vmatpush1.msra.mxu0 0.0
    %76 = vmatprep.subr.mxu0 0.0
    %77 = vmatpush1.msra.mxu0 0.0
    %78 = vmatprep.subr.mxu0 0.0
    %79 = vmatpush1.msra.mxu0 0.0
    %80 = vmatprep.subr.mxu0 0.0
    %81 = vmatpush1.msra.mxu0 0.0
    %82 = vmatprep.subr.mxu0 0.0
    %83 = vmatpush1.msra.mxu0 0.0
    %84 = vmatprep.subr.mxu0 0.0
    %85 = vmatpush1.msra.mxu0 0.0
    %86 = vmatprep.subr.mxu0 0.0
    %87 = vmatpush1.msra.mxu0 0.0
    %88 = vmatprep.subr.mxu0 0.0
    %89 = vmatpush1.msra.mxu0 0.0
    %90 = vmatprep.subr.mxu0 0.0
    %91 = vmatpush1.msra.mxu0 0.0
    %92 = vmatprep.subr.mxu0 0.0
    %93 = vmatpush1.msra.mxu0 0.0
    %94 = vmatprep.subr.mxu0 0.0
    %95 = vmatpush1.msra.mxu0 0.0
    %96 = vmatprep.subr.mxu0 0.0
    %97 = vmatpush1.msra.mxu0 0.0
    %98 = vmatprep.subr.mxu0 0.0
    %99 = vmatpush1.msra.mxu0 0.0
    %100 = vmatprep.subr.mxu0 0.0
    %101 = vmatpush1.msra.mxu0 0.0
    %102 = vmatprep.subr.mxu0 0.0
    %103 = vmatpush1.msra.mxu0 0.0
    %104 = vmatprep.subr.mxu0 0.0
    %105 = vmatpush1.msra.mxu0 0.0
    %106 = vmatprep.subr.mxu0 0.0
    %107 = vmatpush1.msra.mxu0 0.0
    %108 = vmatprep.subr.mxu0 0.0
    %109 = vmatpush1.msra.mxu0 0.0
    %110 = vmatprep.subr.mxu0 0.0
    %111 = vmatpush1.msra.mxu0 0.0
    %112 = vmatprep.subr.mxu0 0.0
    %113 = vmatpush1.msra.mxu0 0.0
    %114 = vmatprep.subr.mxu0 0.0
    %115 = vmatpush1.msra.mxu0 0.0
    %116 = vmatprep.subr.mxu0 0.0
    %117 = vmatpush1.msra.mxu0 0.0
    %118 = vmatprep.subr.mxu0 0.0
    %119 = vmatpush1.msra.mxu0 0.0
    %120 = vmatprep.subr.mxu0 0.0
    %121 = vmatpush1.msra.mxu0 0.0
    %122 = vmatprep.subr.mxu0 0.0
    %123 = vmatpush1.msra.mxu0 0.0
    %124 = vmatprep.subr.mxu0 0.0
    %125 = vmatpush1.msra.mxu0 0.0
    %126 = vmatprep.mubr.f32.mxu0 0.0
    %127 = vmatmul.mubr.f32.gmra.mrb[0].mxu0 %v56
    %v128 = vpop.f32.mrb[0].mxu0
    %v129 = vadd.f32 %v52, %v128
    %v130 = vpop.f32.mrb[0].mxu0
    %131 = vdwg.mxu0
    %v132 = vmax.f32 %v129, 0.0
    %133 = vrot.lane.b32.xlu0 %v132, 4
    %v134 = vpop.permute.xlu0 %133
    %v135 = vsel %vm36, %v134, 0.0
    %136 = vst [vmem:[#allocation3] sm:$0xff] %v135
    %137 = vrot.lane.b32.xlu0 %v132, 2
    %v138 = vpop.permute.xlu0 %137
    %v139 = vsel %vm41, %v138, 0.0
    %140 = vst [vmem:[#allocation3 + $0x8] sm:$0xff] %v139
    %141 = vst [vmem:[#allocation3 + $0x10] sm:$0xff] %v132
    %v142 = vld [vmem:[#allocation3] sm:$0xff]
    %v143 = vld [vmem:[#allocation3 + $0x8] sm:$0xff]
    %v144 = vld [vmem:[#allocation3 + $0x10] sm:$0xff]
    %146 = vset.pattern.permute.xlu0 0
    %147 = vperm.xlu0 %146, %v30
    %v148 = vpop.permute.xlu0 %147
    %vm150 = vcmask 195584
    %v152 = vsel %vm150, %v28, 0
    %154 = vmatprep.subr.mxu0 0.0
    %155 = vmatpush1.msra.mxu0 %v142
    %156 = vmatprep.subr.mxu0 0.0
    %157 = vmatpush1.msra.mxu0 %v143
    %158 = vmatprep.subr.mxu0 0.0
    %159 = vmatpush1.msra.mxu0 %v144
    %160 = vmatprep.subr.mxu0 0.0
    %161 = vmatpush1.msra.mxu0 0.0
    %162 = vmatprep.subr.mxu0 0.0
    %163 = vmatpush1.msra.mxu0 0.0
    %164 = vmatprep.subr.mxu0 0.0
    %165 = vmatpush1.msra.mxu0 0.0
    %166 = vmatprep.subr.mxu0 0.0
    %167 = vmatpush1.msra.mxu0 0.0
    %168 = vmatprep.subr.mxu0 0.0
    %169 = vmatpush1.msra.mxu0 0.0
    %170 = vmatprep.subr.mxu0 0.0
    %171 = vmatpush1.msra.mxu0 0.0
    %172 = vmatprep.subr.mxu0 0.0
    %173 = vmatpush1.msra.mxu0 0.0
    %174 = vmatprep.subr.mxu0 0.0
    %175 = vmatpush1.msra.mxu0 0.0
    %176 = vmatprep.subr.mxu0 0.0
    %177 = vmatpush1.msra.mxu0 0.0
    %178 = vmatprep.subr.mxu0 0.0
    %179 = vmatpush1.msra.mxu0 0.0
    %180 = vmatprep.subr.mxu0 0.0
    %181 = vmatpush1.msra.mxu0 0.0
    %182 = vmatprep.subr.mxu0 0.0
    %183 = vmatpush1.msra.mxu0 0.0
    %184 = vmatprep.subr.mxu0 0.0
    %185 = vmatpush1.msra.mxu0 0.0
    %186 = vmatprep.subr.mxu0 0.0
    %187 = vmatpush1.msra.mxu0 0.0
    %188 = vmatprep.subr.mxu0 0.0
    %189 = vmatpush1.msra.mxu0 0.0
    %190 = vmatprep.subr.mxu0 0.0
    %191 = vmatpush1.msra.mxu0 0.0
    %192 = vmatprep.subr.mxu0 0.0
    %193 = vmatpush1.msra.mxu0 0.0
    %194 = vmatprep.subr.mxu0 0.0
    %195 = vmatpush1.msra.mxu0 0.0
    %196 = vmatprep.subr.mxu0 0.0
    %197 = vmatpush1.msra.mxu0 0.0
    %198 = vmatprep.subr.mxu0 0.0
    %199 = vmatpush1.msra.mxu0 0.0
    %200 = vmatprep.subr.mxu0 0.0
    %201 = vmatpush1.msra.mxu0 0.0
    %202 = vmatprep.subr.mxu0 0.0
    %203 = vmatpush1.msra.mxu0 0.0
    %204 = vmatprep.subr.mxu0 0.0
    %205 = vmatpush1.msra.mxu0 0.0
    %206 = vmatprep.subr.mxu0 0.0
    %207 = vmatpush1.msra.mxu0 0.0
    %208 = vmatprep.subr.mxu0 0.0
    %209 = vmatpush1.msra.mxu0 0.0
    %210 = vmatprep.subr.mxu0 0.0
    %211 = vmatpush1.msra.mxu0 0.0
    %212 = vmatprep.subr.mxu0 0.0
    %213 = vmatpush1.msra.mxu0 0.0
    %214 = vmatprep.subr.mxu0 0.0
    %215 = vmatpush1.msra.mxu0 0.0
    %216 = vmatprep.subr.mxu0 0.0
    %217 = vmatpush1.msra.mxu0 0.0
    %218 = vmatprep.mubr.f32.mxu0 0.0
    %219 = vmatmul.mubr.f32.gmra.mrb[0].mxu0 %v152
    %v220 = vpop.f32.mrb[0].mxu0
    %v221 = vadd.f32 %v148, %v220
    %v222 = vpop.f32.mrb[0].mxu0
    %223 = vdwg.mxu0
    %v224 = vmax.f32 %v221, 0.0
    %226 = vset.pattern.permute.xlu0 0
    %227 = vperm.xlu0 %226, %v32
    %v228 = vpop.permute.xlu0 %227
    %vm230 = vcmask 31744
    %v232 = vsel %vm230, %v31, 0
    %v235 = vsel %vm58, %v35, 0
    %237 = vmatprep.subr.mxu0 0.0
    %238 = vmatpush1.msra.mxu0 %v235
    %239 = vmatprep.subr.mxu0 0.0
    %240 = vmatpush1.msra.mxu0 0.0
    %241 = vmatprep.subr.mxu0 0.0
    %242 = vmatpush1.msra.mxu0 0.0
    %243 = vmatprep.subr.mxu0 0.0
    %244 = vmatpush1.msra.mxu0 0.0
    %245 = vmatprep.subr.mxu0 0.0
    %246 = vmatpush1.msra.mxu0 0.0
    %247 = vmatprep.subr.mxu0 0.0
    %248 = vmatpush1.msra.mxu0 0.0
    %249 = vmatprep.subr.mxu0 0.0
    %250 = vmatpush1.msra.mxu0 0.0
    %251 = vmatprep.subr.mxu0 0.0
    %252 = vmatpush1.msra.mxu0 0.0
    %253 = vmatprep.subr.mxu0 0.0
    %254 = vmatpush1.msra.mxu0 0.0
    %255 = vmatprep.subr.mxu0 0.0
    %256 = vmatpush1.msra.mxu0 0.0
    %257 = vmatprep.subr.mxu0 0.0
    %258 = vmatpush1.msra.mxu0 0.0
    %259 = vmatprep.subr.mxu0 0.0
    %260 = vmatpush1.msra.mxu0 0.0
    %261 = vmatprep.subr.mxu0 0.0
    %262 = vmatpush1.msra.mxu0 0.0
    %263 = vmatprep.subr.mxu0 0.0
    %264 = vmatpush1.msra.mxu0 0.0
    %265 = vmatprep.subr.mxu0 0.0
    %266 = vmatpush1.msra.mxu0 0.0
    %267 = vmatprep.subr.mxu0 0.0
    %268 = vmatpush1.msra.mxu0 0.0
    %269 = vmatprep.subr.mxu0 0.0
    %270 = vmatpush1.msra.mxu0 0.0
    %271 = vmatprep.subr.mxu0 0.0
    %272 = vmatpush1.msra.mxu0 0.0
    %273 = vmatprep.subr.mxu0 0.0
    %274 = vmatpush1.msra.mxu0 0.0
    %275 = vmatprep.subr.mxu0 0.0
    %276 = vmatpush1.msra.mxu0 0.0
    %277 = vmatprep.subr.mxu0 0.0
    %278 = vmatpush1.msra.mxu0 0.0
    %279 = vmatprep.subr.mxu0 0.0
    %280 = vmatpush1.msra.mxu0 0.0
    %281 = vmatprep.subr.mxu0 0.0
    %282 = vmatpush1.msra.mxu0 0.0
    %283 = vmatprep.subr.mxu0 0.0
    %284 = vmatpush1.msra.mxu0 0.0
    %285 = vmatprep.subr.mxu0 0.0
    %286 = vmatpush1.msra.mxu0 0.0
    %287 = vmatprep.subr.mxu0 0.0
    %288 = vmatpush1.msra.mxu0 0.0
    %289 = vmatprep.subr.mxu0 0.0
    %290 = vmatpush1.msra.mxu0 0.0
    %291 = vmatprep.subr.mxu0 0.0
    %292 = vmatpush1.msra.mxu0 0.0
    %293 = vmatprep.subr.mxu0 0.0
    %294 = vmatpush1.msra.mxu0 0.0
    %295 = vmatprep.subr.mxu0 0.0
    %296 = vmatpush1.msra.mxu0 0.0
    %297 = vmatprep.subr.mxu0 0.0
    %298 = vmatpush1.msra.mxu0 0.0
    %299 = vmatprep.subr.mxu0 0.0
    %300 = vmatpush1.msra.mxu0 0.0
    %301 = vmatprep.mubr.f32.mxu0 0.0
    %302 = vmatmul.mubr.f32.gmra.mrb[0].mxu0 %v232
    %v303 = vpop.f32.mrb[0].mxu0
    %v304 = vadd.f32 %v228, %v303
    %v305 = vpop.f32.mrb[0].mxu0
    %306 = vdwg.mxu0
    %v307 = vadd.f32 %v224, %v304
    %v308 = vmax.f32 %v307, 0.0
    %309 = vst [vmem:[#allocation4] sm:$0xff] %v308
    %s310 = scalar_lea.vmem %s0, 4
    %v311 = vld [vmem:[%s310] sm:$0xf]
    %312 = vrot.lane.b32.xlu0 %v311, 4
    %v313 = vpop.permute.xlu0 %312
    %v314 = vsel %vm36, %v313, 0.0
    %315 = vst [vmem:[#allocation2] sm:$0xf] %v314
    %316 = vrot.lane.b32.xlu0 %v311, 2
    %v317 = vpop.permute.xlu0 %316
    %v318 = vsel %vm41, %v317, 0.0
    %319 = vst [vmem:[#allocation2 + $0x4] sm:$0xf] %v318
    %320 = vst [vmem:[#allocation2 + $0x8] sm:$0xf] %v311
    %v321 = vld [vmem:[#allocation2] sm:$0xff]
    %v322 = vld [vmem:[#allocation2 + $0x8] sm:$0xf]
    %v324 = vsel %vm58, %v322, 0
    %326 = vmatprep.subr.mxu0 0.0
    %327 = vmatpush1.msra.mxu0 %v321
    %328 = vmatprep.subr.mxu0 0.0
    %329 = vmatpush1.msra.mxu0 %v324
    %330 = vmatprep.subr.mxu0 0.0
    %331 = vmatpush1.msra.mxu0 0.0
    %332 = vmatprep.subr.mxu0 0.0
    %333 = vmatpush1.msra.mxu0 0.0
    %334 = vmatprep.subr.mxu0 0.0
    %335 = vmatpush1.msra.mxu0 0.0
    %336 = vmatprep.subr.mxu0 0.0
    %337 = vmatpush1.msra.mxu0 0.0
    %338 = vmatprep.subr.mxu0 0.0
    %339 = vmatpush1.msra.mxu0 0.0
    %340 = vmatprep.subr.mxu0 0.0
    %341 = vmatpush1.msra.mxu0 0.0
    %342 = vmatprep.subr.mxu0 0.0
    %343 = vmatpush1.msra.mxu0 0.0
    %344 = vmatprep.subr.mxu0 0.0
    %345 = vmatpush1.msra.mxu0 0.0
    %346 = vmatprep.subr.mxu0 0.0
    %347 = vmatpush1.msra.mxu0 0.0
    %348 = vmatprep.subr.mxu0 0.0
    %349 = vmatpush1.msra.mxu0 0.0
    %350 = vmatprep.subr.mxu0 0.0
    %351 = vmatpush1.msra.mxu0 0.0
    %352 = vmatprep.subr.mxu0 0.0
    %353 = vmatpush1.msra.mxu0 0.0
    %354 = vmatprep.subr.mxu0 0.0
    %355 = vmatpush1.msra.mxu0 0.0
    %356 = vmatprep.subr.mxu0 0.0
    %357 = vmatpush1.msra.mxu0 0.0
    %358 = vmatprep.subr.mxu0 0.0
    %359 = vmatpush1.msra.mxu0 0.0
    %360 = vmatprep.subr.mxu0 0.0
    %361 = vmatpush1.msra.mxu0 0.0
    %362 = vmatprep.subr.mxu0 0.0
    %363 = vmatpush1.msra.mxu0 0.0
    %364 = vmatprep.subr.mxu0 0.0
    %365 = vmatpush1.msra.mxu0 0.0
    %366 = vmatprep.subr.mxu0 0.0
    %367 = vmatpush1.msra.mxu0 0.0
    %368 = vmatprep.subr.mxu0 0.0
    %369 = vmatpush1.msra.mxu0 0.0
    %370 = vmatprep.subr.mxu0 0.0
    %371 = vmatpush1.msra.mxu0 0.0
    %372 = vmatprep.subr.mxu0 0.0
    %373 = vmatpush1.msra.mxu0 0.0
    %374 = vmatprep.subr.mxu0 0.0
    %375 = vmatpush1.msra.mxu0 0.0
    %376 = vmatprep.subr.mxu0 0.0
    %377 = vmatpush1.msra.mxu0 0.0
    %378 = vmatprep.subr.mxu0 0.0
    %379 = vmatpush1.msra.mxu0 0.0
    %380 = vmatprep.subr.mxu0 0.0
    %381 = vmatpush1.msra.mxu0 0.0
    %382 = vmatprep.subr.mxu0 0.0
    %383 = vmatpush1.msra.mxu0 0.0
    %384 = vmatprep.subr.mxu0 0.0
    %385 = vmatpush1.msra.mxu0 0.0
    %386 = vmatprep.subr.mxu0 0.0
    %387 = vmatpush1.msra.mxu0 0.0
    %388 = vmatprep.subr.mxu0 0.0
    %389 = vmatpush1.msra.mxu0 0.0
    %390 = vmatprep.mubr.f32.mxu0 0.0
    %391 = vmatmul.mubr.f32.gmra.mrb[0].mxu0 %v56
    %v392 = vpop.f32.mrb[0].mxu0
    %v393 = vadd.f32 %v52, %v392
    %v394 = vpop.f32.mrb[0].mxu0
    %395 = vdwg.mxu0
    %v396 = vmax.f32 %v393, 0.0
    %397 = vrot.lane.b32.xlu0 %v396, 4
    %v398 = vpop.permute.xlu0 %397
    %v399 = vsel %vm36, %v398, 0.0
    %400 = vst [vmem:[#allocation3] sm:$0xff] %v399
    %401 = vrot.lane.b32.xlu0 %v396, 2
    %v402 = vpop.permute.xlu0 %401
    %v403 = vsel %vm41, %v402, 0.0
    %404 = vst [vmem:[#allocation3 + $0x8] sm:$0xff] %v403
    %405 = vst [vmem:[#allocation3 + $0x10] sm:$0xff] %v396
    %v406 = vld [vmem:[#allocation3] sm:$0xff]
    %v407 = vld [vmem:[#allocation3 + $0x8] sm:$0xff]
    %v408 = vld [vmem:[#allocation3 + $0x10] sm:$0xff]
    %409 = vmatprep.subr.mxu0 0.0
    %410 = vmatpush1.msra.mxu0 %v406
    %411 = vmatprep.subr.mxu0 0.0
    %412 = vmatpush1.msra.mxu0 %v407
    %413 = vmatprep.subr.mxu0 0.0
    %414 = vmatpush1.msra.mxu0 %v408
    %415 = vmatprep.subr.mxu0 0.0
    %416 = vmatpush1.msra.mxu0 0.0
    %417 = vmatprep.subr.mxu0 0.0
    %418 = vmatpush1.msra.mxu0 0.0
    %419 = vmatprep.subr.mxu0 0.0
    %420 = vmatpush1.msra.mxu0 0.0
    %421 = vmatprep.subr.mxu0 0.0
    %422 = vmatpush1.msra.mxu0 0.0
    %423 = vmatprep.subr.mxu0 0.0
    %424 = vmatpush1.msra.mxu0 0.0
    %425 = vmatprep.subr.mxu0 0.0
    %426 = vmatpush1.msra.mxu0 0.0
    %427 = vmatprep.subr.mxu0 0.0
    %428 = vmatpush1.msra.mxu0 0.0
    %429 = vmatprep.subr.mxu0 0.0
    %430 = vmatpush1.msra.mxu0 0.0
    %431 = vmatprep.subr.mxu0 0.0
    %432 = vmatpush1.msra.mxu0 0.0
    %433 = vmatprep.subr.mxu0 0.0
    %434 = vmatpush1.msra.mxu0 0.0
    %435 = vmatprep.subr.mxu0 0.0
    %436 = vmatpush1.msra.mxu0 0.0
    %437 = vmatprep.subr.mxu0 0.0
    %438 = vmatpush1.msra.mxu0 0.0
    %439 = vmatprep.subr.mxu0 0.0
    %440 = vmatpush1.msra.mxu0 0.0
    %441 = vmatprep.subr.mxu0 0.0
    %442 = vmatpush1.msra.mxu0 0.0
    %443 = vmatprep.subr.mxu0 0.0
    %444 = vmatpush1.msra.mxu0 0.0
    %445 = vmatprep.subr.mxu0 0.0
    %446 = vmatpush1.msra.mxu0 0.0
    %447 = vmatprep.subr.mxu0 0.0
    %448 = vmatpush1.msra.mxu0 0.0
    %449 = vmatprep.subr.mxu0 0.0
    %450 = vmatpush1.msra.mxu0 0.0
    %451 = vmatprep.subr.mxu0 0.0
    %452 = vmatpush1.msra.mxu0 0.0
    %453 = vmatprep.subr.mxu0 0.0
    %454 = vmatpush1.msra.mxu0 0.0
    %455 = vmatprep.subr.mxu0 0.0
    %456 = vmatpush1.msra.mxu0 0.0
    %457 = vmatprep.subr.mxu0 0.0
    %458 = vmatpush1.msra.mxu0 0.0
    %459 = vmatprep.subr.mxu0 0.0
    %460 = vmatpush1.msra.mxu0 0.0
    %461 = vmatprep.subr.mxu0 0.0
    %462 = vmatpush1.msra.mxu0 0.0
    %463 = vmatprep.subr.mxu0 0.0
    %464 = vmatpush1.msra.mxu0 0.0
    %465 = vmatprep.subr.mxu0 0.0
    %466 = vmatpush1.msra.mxu0 0.0
    %467 = vmatprep.subr.mxu0 0.0
    %468 = vmatpush1.msra.mxu0 0.0
    %469 = vmatprep.subr.mxu0 0.0
    %470 = vmatpush1.msra.mxu0 0.0
    %471 = vmatprep.subr.mxu0 0.0
    %472 = vmatpush1.msra.mxu0 0.0
    %473 = vmatprep.mubr.f32.mxu0 0.0
    %474 = vmatmul.mubr.f32.gmra.mrb[0].mxu0 %v152
    %v475 = vpop.f32.mrb[0].mxu0
    %v476 = vadd.f32 %v148, %v475
    %v477 = vpop.f32.mrb[0].mxu0
    %478 = vdwg.mxu0
    %v479 = vmax.f32 %v476, 0.0
    %v481 = vsel %vm58, %v311, 0
    %483 = vmatprep.subr.mxu0 0.0
    %484 = vmatpush1.msra.mxu0 %v481
    %485 = vmatprep.subr.mxu0 0.0
    %486 = vmatpush1.msra.mxu0 0.0
    %487 = vmatprep.subr.mxu0 0.0
    %488 = vmatpush1.msra.mxu0 0.0
    %489 = vmatprep.subr.mxu0 0.0
    %490 = vmatpush1.msra.mxu0 0.0
    %491 = vmatprep.subr.mxu0 0.0
    %492 = vmatpush1.msra.mxu0 0.0
    %493 = vmatprep.subr.mxu0 0.0
    %494 = vmatpush1.msra.mxu0 0.0
    %495 = vmatprep.subr.mxu0 0.0
    %496 = vmatpush1.msra.mxu0 0.0
    %497 = vmatprep.subr.mxu0 0.0
    %498 = vmatpush1.msra.mxu0 0.0
    %499 = vmatprep.subr.mxu0 0.0
    %500 = vmatpush1.msra.mxu0 0.0
    %501 = vmatprep.subr.mxu0 0.0
    %502 = vmatpush1.msra.mxu0 0.0
    %503 = vmatprep.subr.mxu0 0.0
    %504 = vmatpush1.msra.mxu0 0.0
    %505 = vmatprep.subr.mxu0 0.0
    %506 = vmatpush1.msra.mxu0 0.0
    %507 = vmatprep.subr.mxu0 0.0
    %508 = vmatpush1.msra.mxu0 0.0
    %509 = vmatprep.subr.mxu0 0.0
    %510 = vmatpush1.msra.mxu0 0.0
    %511 = vmatprep.subr.mxu0 0.0
    %512 = vmatpush1.msra.mxu0 0.0
    %513 = vmatprep.subr.mxu0 0.0
    %514 = vmatpush1.msra.mxu0 0.0
    %515 = vmatprep.subr.mxu0 0.0
    %516 = vmatpush1.msra.mxu0 0.0
    %517 = vmatprep.subr.mxu0 0.0
    %518 = vmatpush1.msra.mxu0 0.0
    %519 = vmatprep.subr.mxu0 0.0
    %520 = vmatpush1.msra.mxu0 0.0
    %521 = vmatprep.subr.mxu0 0.0
    %522 = vmatpush1.msra.mxu0 0.0
    %523 = vmatprep.subr.mxu0 0.0
    %524 = vmatpush1.msra.mxu0 0.0
    %525 = vmatprep.subr.mxu0 0.0
    %526 = vmatpush1.msra.mxu0 0.0
    %527 = vmatprep.subr.mxu0 0.0
    %528 = vmatpush1.msra.mxu0 0.0
    %529 = vmatprep.subr.mxu0 0.0
    %530 = vmatpush1.msra.mxu0 0.0
    %531 = vmatprep.subr.mxu0 0.0
    %532 = vmatpush1.msra.mxu0 0.0
    %533 = vmatprep.subr.mxu0 0.0
    %534 = vmatpush1.msra.mxu0 0.0
    %535 = vmatprep.subr.mxu0 0.0
    %536 = vmatpush1.msra.mxu0 0.0
    %537 = vmatprep.subr.mxu0 0.0
    %538 = vmatpush1.msra.mxu0 0.0
    %539 = vmatprep.subr.mxu0 0.0
    %540 = vmatpush1.msra.mxu0 0.0
    %541 = vmatprep.subr.mxu0 0.0
    %542 = vmatpush1.msra.mxu0 0.0
    %543 = vmatprep.subr.mxu0 0.0
    %544 = vmatpush1.msra.mxu0 0.0
    %545 = vmatprep.subr.mxu0 0.0
    %546 = vmatpush1.msra.mxu0 0.0
    %547 = vmatprep.mubr.f32.mxu0 0.0
    %548 = vmatmul.mubr.f32.gmra.mrb[0].mxu0 %v232
    %v549 = vpop.f32.mrb[0].mxu0
    %v550 = vadd.f32 %v228, %v549
    %v551 = vpop.f32.mrb[0].mxu0
    %552 = vdwg.mxu0
    %v553 = vadd.f32 %v479, %v550
    %v554 = vmax.f32 %v553, 0.0
    %s555 = scalar_lea.vmem [#allocation4], 8
    %556 = vst [vmem:[%s555] sm:$0xff] %v554
    // Predicated region
    $region30: #{tpu_custom_call.1} parent=1 // pred_check
      _
    $region31: #{tpu_custom_call.1} parent=1 // pred_check_branch
      %558 = sbr.rel (0) target = $region33
    $region32: #{tpu_custom_call.1} parent=1 // pred_region
      %s560 = ssub.s32 256, 256
      %561 = vsyncadd [#allocation5], %s560
      %s562 = sshll.u32 [#allocation4], 4
      %s563 = int_to_ptr.vmem [resolvable:$true] %s562
      %568 = dma.vmem_to_hbm [thread:$0]  %s563, 256, %s7, [#allocation5], 128, 128, 8
    $region33: #{tpu_custom_call.1} parent=1 // pred_fallthru
      _
    // Predicated region
    $region34: #{tpu_custom_call.1} parent=1 // pred_check
      _
    $region35: #{tpu_custom_call.1} parent=1 // pred_check_branch
      %570 = sbr.rel (0) target = $region37
    $region36: #{tpu_custom_call.1} parent=1 // pred_region
      %571 = dma.done [#allocation5], 256
    $region37: #{tpu_custom_call.1} parent=1 // pred_fallthru
      _
    %572 = vsyncpa [#allocation5], 1

</llo_original>
